<compile_context>
chip_gen: v7x
topology: tpu7x:2x2x1
jax: 0.10.0
libtpu: 0.0.40
codegen_flags: <defaults>
</compile_context>

<pallas_src>
import functools

import jax
import jax.numpy as jnp
from jax.experimental import pallas as pl
from jax.experimental.pallas import tpu as pltpu

LANES = 128  # TPU vreg lane width


def _s_stencil_kernel(ls_ref, out_ref, *, d):
    """Compose the skew-symmetric stencil [-ls, -1, 0, 1, ls] with ONE full-tile store.

    ls_ref : (1, KPAD) — ls values placed (wrapper layout plumbing) at lanes [0, d)
             and again at lanes [d+3, 2d+3); zeros elsewhere.
    out_ref: (1, KPAD) — lanes >= K are written as zero and sliced away by the wrapper.
    """
    kpad = out_ref.shape[-1]
    lane = jax.lax.broadcasted_iota(jnp.int32, (1, kpad), 1)
    # Fixed central stencil [-1, 0, 1] at lanes [d, d+3), built in-kernel from the iota.
    mid = jnp.where(lane == d, -1.0,
                    jnp.where(lane == d + 2, 1.0, 0.0)).astype(out_ref.dtype)
    # Negate the left half, keep the right half positive. Lanes [d, d+3) and lanes
    # >= 2d+3 of ls_ref hold zeros, so the select is exact everywhere.
    sign = jnp.where(lane < d, -1.0, 1.0).astype(out_ref.dtype)
    # Single unmasked, lane-dense vector store.
    out_ref[...] = sign * ls_ref[...] + mid


@functools.partial(jax.jit, static_argnums=(1, 2))
def _s_forward(ls, kernel_size, d):
    """Pallas forward for kernel_size > 1 (kernel_size = 2*d + 3, odd)."""
    dtype = ls.dtype
    kpad = LANES * pl.cdiv(kernel_size, LANES)
    # Lane-dense layout plumbing: place ls at both target lane ranges of one padded row.
    ls_pad = jnp.zeros((1, kpad), dtype=dtype)
    if d > 0:
        ls_pad = ls_pad.at[0, 0:d].set(ls).at[0, d + 3:2 * d + 3].set(ls)
    out_pad = pl.pallas_call(
        functools.partial(_s_stencil_kernel, d=d),
        out_shape=jax.ShapeDtypeStruct((1, kpad), dtype),
        in_specs=[pl.BlockSpec(memory_space=pltpu.MemorySpace.VMEM)],
        out_specs=pl.BlockSpec(memory_space=pltpu.MemorySpace.VMEM),
    )(ls_pad)
    return out_pad[:, :kernel_size].reshape(1, 1, kernel_size)


class SEstimatorPallas:
    """JAX/Pallas re-implementation of phlearn S_estimator."""

    def __init__(self, kernel_size=3, dtype=jnp.float32, key=None):
        self.kernel_size = int(kernel_size)
        self.dtype = dtype
        if self.kernel_size > 1:
            # The PyTorch reshape(1, 1, kernel_size) only works when 2*d + 3 == kernel_size,
            # i.e. odd kernel_size >= 3. Reject even sizes instead of leaving lanes unwritten.
            assert self.kernel_size % 2 == 1, "kernel_size must be odd (>= 3) or <= 1"
            d = (self.kernel_size - 3) // 2
            self.d = d
            if key is None:
                key = jax.random.PRNGKey(0)
            # PyTorch initializes this parameter to zeros; use a deterministic non-zero
            # init so the negate/concat path is actually exercised in the checks below.
            self.ls = (jax.random.normal(key, (d,), dtype=dtype)
                       if d > 0 else jnp.zeros((0,), dtype=dtype))
        else:
            self.d = 0
            self.ls = None

    def __call__(self, x=None):
        if self.kernel_size <= 1:
            # One scalar zero — not worth a Pallas launch (pure launch/DMA overhead).
            return jnp.zeros((1, 1, 1), dtype=self.dtype)
        return _s_forward(self.ls, self.kernel_size, self.d)


def _reference(ls, kernel_size, dtype=jnp.float32):
    """Pure-JAX reference mirroring the PyTorch forward."""
    if kernel_size <= 1:
        return jnp.zeros((1, 1, 1), dtype=dtype)
    mid = jnp.array([-1.0, 0.0, 1.0], dtype=dtype)
    if ls is None or ls.shape[0] == 0:
        return mid.reshape(1, 1, kernel_size)
    return jnp.concatenate([-ls, mid, ls]).reshape(1, 1, kernel_size)


if __name__ == "__main__":
    key = jax.random.PRNGKey(0)

    # Main case: kernel_size = 7 -> d = 2, output (1, 1, 7) = [-ls0, -ls1, -1, 0, 1, ls0, ls1]
    mod7 = SEstimatorPallas(kernel_size=7, key=key)
    out7 = jax.block_until_ready(mod7())
    ref7 = _reference(mod7.ls, 7)
    assert out7.shape == (1, 1, 7), out7.shape
    assert jnp.allclose(out7, ref7, atol=1e-6), (out7, ref7)

    # Larger odd case: kernel_size = 11 -> d = 4
    mod11 = SEstimatorPallas(kernel_size=11, key=jax.random.PRNGKey(1))
    out11 = jax.block_until_ready(mod11())
    ref11 = _reference(mod11.ls, 11)
    assert out11.shape == (1, 1, 11), out11.shape
    assert jnp.allclose(out11, ref11, atol=1e-6), (out11, ref11)

    # kernel_size = 3 -> d = 0, output is the fixed stencil [-1, 0, 1]
    mod3 = SEstimatorPallas(kernel_size=3, key=key)
    out3 = jax.block_until_ready(mod3())
    ref3 = _reference(None, 3)
    assert out3.shape == (1, 1, 3), out3.shape
    assert jnp.allclose(out3, ref3, atol=1e-6), (out3, ref3)

    # kernel_size = 1 -> scalar zero, shape (1, 1, 1)
    mod1 = SEstimatorPallas(kernel_size=1, key=key)
    out1 = jax.block_until_ready(mod1())
    assert out1.shape == (1, 1, 1), out1.shape
    assert jnp.allclose(out1, jnp.zeros((1, 1, 1))), out1

    print("KERNEL_OK")
</pallas_src>

<mosaic_0001>
module attributes {stable_mosaic.version = 11 : i64} {
  func.func @_s_stencil_kernel(%arg0: memref<1x128xf32, #tpu.memory_space<vmem>>, %arg1: memref<1x128xf32, #tpu.memory_space<vmem>>) attributes {dimension_semantics = [], scalar_prefetch = 0 : i64, scratch_operands = 0 : i64, tpu.core_type = #tpu.core_type<tc>} {
    %0 = tpu.iota {dimensions = array<i32: 1>} : vector<1x128xi32>
    %c2_i32 = arith.constant 2 : i32
    %1 = vector.broadcast %c2_i32 : i32 to vector<1x128xi32>
    %2 = arith.cmpi eq, %0, %1 : vector<1x128xi32>
    %c4_i32 = arith.constant 4 : i32
    %3 = vector.broadcast %c4_i32 : i32 to vector<1x128xi32>
    %4 = arith.cmpi eq, %0, %3 : vector<1x128xi32>
    %cst = arith.constant 1.000000e+00 : f32
    %cst_0 = arith.constant 0.000000e+00 : f32
    %5 = vector.broadcast %cst : f32 to vector<1x128xf32>
    %6 = vector.broadcast %cst_0 : f32 to vector<1x128xf32>
    %7 = arith.select %4, %5, %6 : vector<1x128xi1>, vector<1x128xf32>
    %cst_1 = arith.constant -1.000000e+00 : f32
    %8 = vector.broadcast %cst_1 : f32 to vector<1x128xf32>
    %9 = arith.select %2, %8, %7 : vector<1x128xi1>, vector<1x128xf32>
    %c2_i32_2 = arith.constant 2 : i32
    %10 = vector.broadcast %c2_i32_2 : i32 to vector<1x128xi32>
    %11 = arith.cmpi slt, %0, %10 : vector<1x128xi32>
    %cst_3 = arith.constant -1.000000e+00 : f32
    %cst_4 = arith.constant 1.000000e+00 : f32
    %12 = vector.broadcast %cst_3 : f32 to vector<1x128xf32>
    %13 = vector.broadcast %cst_4 : f32 to vector<1x128xf32>
    %14 = arith.select %11, %12, %13 : vector<1x128xi1>, vector<1x128xf32>
    %c0 = arith.constant 0 : index
    %c0_5 = arith.constant 0 : index
    %15 = vector.load %arg0[%c0, %c0_5] : memref<1x128xf32, #tpu.memory_space<vmem>>, vector<1x128xf32>
    %16 = arith.mulf %14, %15 : vector<1x128xf32>
    %17 = arith.addf %16, %9 : vector<1x128xf32>
    %c0_6 = arith.constant 0 : index
    %c0_7 = arith.constant 0 : index
    %18 = vector.load %arg1[%c0_6, %c0_7] : memref<1x128xf32, #tpu.memory_space<vmem>>, vector<1x128xf32>
    tpu.vector_store %arg1[%c0_6, %c0_7], %17 {strides = array<i32>} : memref<1x128xf32, #tpu.memory_space<vmem>>, vector<1x128xf32>,
    return
  }
}

</mosaic_0001>

<llo_original>
// kernel: _s_forward.1
$region0: #{_s_forward.1}
  #allocation0 [shape = 'u32[]', space=smem, size = 0x4, offset = 0x4, fixed_abs, tag = 'smem constant byte address 0x4 - core index']
  #allocation1 [shape = 'u32[144,128]{1,0:T(1,128)}', space=vmem, size = 0x12000, scoped, tag = 'internal scratch']
  %s0 = inlined_call_operand.vmem [shape: f32[1,128], index: 0, kind: input, shape index: {}]
  %s1 = inlined_call_operand.vmem [shape: f32[1,128], index: 1, kind: output, shape index: {}]
  %s2 = sld [smem:[#allocation0]]
  $region14: #{_s_forward.1} parent=0
    _
  %s4 = ssub.s32 1, %s2
  %s5 = scalar_select 0, %s4, %s2
  // Predicated region
  $region2: #{_s_forward.1} parent=0 // pred_check
    _
  $region3: #{_s_forward.1} parent=0 // pred_check_branch
    %7 = sbr.rel (0) target = $region5
  $region4: #{_s_forward.1} parent=0 // pred_region
    _
  $region5: #{_s_forward.1} parent=0 // pred_fallthru
    _
  %v8 = vlaneseq
  %v9 = vand.u32 %v8, 127
  %vm10 = vcmp.eq.s32.totalorder %v9, 2
  %vm11 = vcmp.eq.s32.totalorder %v9, 4
  %v12 = vsel %vm11, 1.0, 0.0
  %v13 = vsel %vm10, -1.0, %v12
  %vm14 = vcmp.lt.s32.totalorder %v9, 2
  %v15 = vsel %vm14, -1.0, 1.0
  %v16 = vld [vmem:[%s0] sm:$0x1]
  %v17 = vmul.f32 %v15, %v16
  %v18 = vadd.f32 %v17, %v13
  %19 = vst [vmem:[%s1] sm:$0x1] %v18
  // Predicated region
  $region6: #{_s_forward.1} parent=0 // pred_check
    _
  $region7: #{_s_forward.1} parent=0 // pred_check_branch
    %21 = sbr.rel (0) target = $region9
  $region8: #{_s_forward.1} parent=0 // pred_region
    _
  $region9: #{_s_forward.1} parent=0 // pred_fallthru
    _
  // Predicated region
  $region10: #{_s_forward.1} parent=0 // pred_check
    _
  $region11: #{_s_forward.1} parent=0 // pred_check_branch
    %23 = sbr.rel (0) target = $region13
  $region12: #{_s_forward.1} parent=0 // pred_region
    _
  $region13: #{_s_forward.1} parent=0 // pred_fallthru
    _

</llo_original>
